<compile_context>
chip_gen: v6e
topology: v6e:2x2x1
jax: 0.10.0
libtpu: 0.0.40
codegen_flags: <defaults>
</compile_context>

<pallas_src>
import functools
import math

import jax
import jax.numpy as jnp
from jax import lax
from jax.experimental import pallas as pl
from jax.experimental.pallas import tpu as pltpu


def _round_up(x, m):
    return ((x + m - 1) // m) * m


def _pick_tiles(M, N, K, itemsize):
    # Wider tiles for narrower dtypes (fewer ~0.35us grid steps, better DMA
    # amortization); (8,128)-aligned. Small problems collapse to one tile.
    base_mn = 512 if itemsize <= 2 else 256
    tm = min(base_mn, _round_up(M, 8))
    tn = min(base_mn, _round_up(N, 128))
    tk = min(512, _round_up(K, 128))
    return tm, tn, tk


# ---------------------------------------------------------------------------
# Tiled linear: y = x @ w + b   (used for the output projection)
# ---------------------------------------------------------------------------
def _linear_kernel(x_ref, w_ref, b_ref, o_ref, acc_ref):
    kk = pl.program_id(2)

    @pl.when(kk == 0)
    def _():
        acc_ref[...] = jnp.zeros_like(acc_ref)

    acc_ref[...] += jnp.dot(x_ref[...], w_ref[...],
                            preferred_element_type=jnp.float32)

    @pl.when(kk == pl.num_programs(2) - 1)
    def _():
        # Bias (kept f32) is applied exactly once, in the reduction epilogue.
        o_ref[...] = (acc_ref[...] + b_ref[...]).astype(o_ref.dtype)


def linear_pallas(x2, w, b, *, out_dtype=None):
    """x2: (M, K), w: (K, N), b: (N,) -> (M, N)."""
    M, K = x2.shape
    Kw, N = w.shape
    assert K == Kw
    out_dtype = x2.dtype if out_dtype is None else out_dtype

    tm, tn, tk = _pick_tiles(M, N, K, x2.dtype.itemsize)
    Mp, Np, Kp = _round_up(M, tm), _round_up(N, tn), _round_up(K, tk)

    xp = x2 if (Mp == M and Kp == K) else jnp.pad(x2, ((0, Mp - M), (0, Kp - K)))
    wp = w if (Kp == K and Np == N) else jnp.pad(w, ((0, Kp - K), (0, Np - N)))
    bp = (b if Np == N else jnp.pad(b, (0, Np - N))).reshape(1, Np)
    bp = bp.astype(jnp.float32)

    grid = (Mp // tm, Np // tn, Kp // tk)
    itemsize = x2.dtype.itemsize
    out = pl.pallas_call(
        _linear_kernel,
        out_shape=jax.ShapeDtypeStruct((Mp, Np), out_dtype),
        grid_spec=pltpu.PrefetchScalarGridSpec(
            num_scalar_prefetch=0,
            grid=grid,
            in_specs=[
                pl.BlockSpec((tm, tk), lambda i, j, kk: (i, kk)),
                pl.BlockSpec((tk, tn), lambda i, j, kk: (kk, j)),
                pl.BlockSpec((1, tn), lambda i, j, kk: (0, j)),
            ],
            out_specs=pl.BlockSpec((tm, tn), lambda i, j, kk: (i, j)),
            scratch_shapes=[pltpu.VMEM((tm, tn), jnp.float32)],
        ),
        compiler_params=pltpu.CompilerParams(
            dimension_semantics=("parallel", "parallel", "arbitrary")),
        cost_estimate=pl.CostEstimate(
            flops=2 * Mp * Np * Kp,
            transcendentals=0,
            bytes_accessed=(Mp * Kp + Kp * Np + Mp * Np) * itemsize),
    )(xp, wp, bp)

    if Mp != M or Np != N:
        out = out[:M, :N]
    return out


# ---------------------------------------------------------------------------
# Fused QKV projection: q, k, v = x @ Wq + bq, x @ Wk + bk, x @ Wv + bv
# (reads the x tile once per step, writes q/k/v in (B*T, C) layout directly)
# ---------------------------------------------------------------------------
def _qkv_proj_kernel(x_ref, wq_ref, wk_ref, wv_ref, bq_ref, bk_ref, bv_ref,
                     q_ref, k_ref, v_ref, qacc, kacc, vacc):
    kk = pl.program_id(2)

    @pl.when(kk == 0)
    def _():
        qacc[...] = jnp.zeros_like(qacc)
        kacc[...] = jnp.zeros_like(kacc)
        vacc[...] = jnp.zeros_like(vacc)

    x = x_ref[...]
    qacc[...] += jnp.dot(x, wq_ref[...], preferred_element_type=jnp.float32)
    kacc[...] += jnp.dot(x, wk_ref[...], preferred_element_type=jnp.float32)
    vacc[...] += jnp.dot(x, wv_ref[...], preferred_element_type=jnp.float32)

    @pl.when(kk == pl.num_programs(2) - 1)
    def _():
        q_ref[...] = (qacc[...] + bq_ref[...]).astype(q_ref.dtype)
        k_ref[...] = (kacc[...] + bk_ref[...]).astype(k_ref.dtype)
        v_ref[...] = (vacc[...] + bv_ref[...]).astype(v_ref.dtype)


def qkv_proj_pallas(x2, w_qkv, b_qkv):
    """x2: (M, K), w_qkv: (K, 3C), b_qkv: (3C,) -> q, k, v each (M, C)."""
    M, K = x2.shape
    Kw, N3 = w_qkv.shape
    assert K == Kw and N3 % 3 == 0
    C = N3 // 3

    tm, tn, tk = _pick_tiles(M, C, K, x2.dtype.itemsize)
    Mp, Np, Kp = _round_up(M, tm), _round_up(C, tn), _round_up(K, tk)

    xp = x2 if (Mp == M and Kp == K) else jnp.pad(x2, ((0, Mp - M), (0, Kp - K)))

    def prep_w(i):
        w = w_qkv[:, i * C:(i + 1) * C]
        if Kp != K or Np != C:
            w = jnp.pad(w, ((0, Kp - K), (0, Np - C)))
        return w

    def prep_b(i):
        bb = b_qkv[i * C:(i + 1) * C].astype(jnp.float32)
        if Np != C:
            bb = jnp.pad(bb, (0, Np - C))
        return bb.reshape(1, Np)

    wq, wk, wv = prep_w(0), prep_w(1), prep_w(2)
    bq, bk, bv = prep_b(0), prep_b(1), prep_b(2)

    grid = (Mp // tm, Np // tn, Kp // tk)
    itemsize = x2.dtype.itemsize
    out_sds = jax.ShapeDtypeStruct((Mp, Np), x2.dtype)
    x_spec = pl.BlockSpec((tm, tk), lambda i, j, kk: (i, kk))
    w_spec = pl.BlockSpec((tk, tn), lambda i, j, kk: (kk, j))
    b_spec = pl.BlockSpec((1, tn), lambda i, j, kk: (0, j))
    o_spec = pl.BlockSpec((tm, tn), lambda i, j, kk: (i, j))

    q, k, v = pl.pallas_call(
        _qkv_proj_kernel,
        out_shape=(out_sds, out_sds, out_sds),
        grid_spec=pltpu.PrefetchScalarGridSpec(
            num_scalar_prefetch=0,
            grid=grid,
            in_specs=[x_spec, w_spec, w_spec, w_spec, b_spec, b_spec, b_spec],
            out_specs=(o_spec, o_spec, o_spec),
            scratch_shapes=[pltpu.VMEM((tm, tn), jnp.float32)] * 3,
        ),
        compiler_params=pltpu.CompilerParams(
            dimension_semantics=("parallel", "parallel", "arbitrary")),
        cost_estimate=pl.CostEstimate(
            flops=2 * Mp * 3 * Np * Kp,
            transcendentals=0,
            bytes_accessed=(Mp * Kp + 3 * Kp * Np + 3 * Mp * Np) * itemsize),
    )(xp, wq, wk, wv, bq, bk, bv)

    if Mp != M or Np != C:
        q, k, v = q[:M, :C], k[:M, :C], v[:M, :C]
    return q, k, v


# ---------------------------------------------------------------------------
# Causal multi-head flash attention (online softmax, heads fused in-kernel)
# ---------------------------------------------------------------------------
def _flash_kernel(q_ref, k_ref, v_ref, o_ref, m_scr, l_scr, acc_scr,
                  *, scale, blk, n_head, hs):
    qi = pl.program_id(1)
    ki = pl.program_id(2)

    @pl.when(ki == 0)
    def _():
        m_scr[...] = jnp.full_like(m_scr, -jnp.inf)
        l_scr[...] = jnp.zeros_like(l_scr)
        acc_scr[...] = jnp.zeros_like(acc_scr)

    def process(masked):
        # Pre-scale q once per step ((blk, C) mul, cheaper than scaling the
        # per-head (blk, blk) score matrices).
        q = q_ref[0] * scale                       # (blk, C)
        k = k_ref[0]                               # (blk, C)
        v = v_ref[0]                               # (blk, C)
        m_prev = m_scr[...]                        # (blk, H) f32
        l_prev = l_scr[...]                        # (blk, H) f32
        acc_prev = acc_scr[...]                    # (blk, C) f32

        if masked:
            # Diagonal block (qi == ki): in-block offsets line up, so a
            # relative row >= col comparison implements the causal mask.
            row = lax.broadcasted_iota(jnp.int32, (blk, blk), 0)
            col = lax.broadcasted_iota(jnp.int32, (blk, blk), 1)
            causal = row >= col

        m_cols, l_cols, acc_cols = [], [], []
        for h in range(n_head):                    # static, unrolled head loop
            sl = slice(h * hs, (h + 1) * hs)
            s = lax.dot_general(q[:, sl], k[:, sl], (((1,), (1,)), ((), ())),
                                preferred_element_type=jnp.float32)
            if masked:
                s = jnp.where(causal, s, -1e30)
            m_h = m_prev[:, h:h + 1]
            m_new = jnp.maximum(m_h, s.max(axis=-1, keepdims=True))
            alpha = jnp.exp(m_h - m_new)
            p = jnp.exp(s - m_new)
            l_cols.append(alpha * l_prev[:, h:h + 1]
                          + p.sum(axis=-1, keepdims=True))
            pv = jnp.dot(p.astype(v.dtype), v[:, sl],
                         preferred_element_type=jnp.float32)
            acc_cols.append(alpha * acc_prev[:, sl] + pv)
            m_cols.append(m_new)

        # Full-width stores only (no partial lane writes to scratch).
        m_scr[...] = jnp.concatenate(m_cols, axis=1)
        l_scr[...] = jnp.concatenate(l_cols, axis=1)
        acc_scr[...] = jnp.concatenate(acc_cols, axis=1)

    # Strictly-below-diagonal blocks: no mask work at all.
    @pl.when(ki < qi)
    def _():
        process(False)

    # Diagonal block is the only one that needs the causal mask.
    @pl.when(ki == qi)
    def _():
        process(True)

    # ki > qi blocks: compute skipped AND no DMA issued (clamped index_map).

    @pl.when(ki == pl.num_programs(2) - 1)
    def _():
        inv_l = pl.reciprocal(l_scr[...], approx=True)   # (blk, H), EUP slot
        acc = acc_scr[...]
        o_cols = [acc[:, h * hs:(h + 1) * hs] * inv_l[:, h:h + 1]
                  for h in range(n_head)]
        o_ref[0] = jnp.concatenate(o_cols, axis=1).astype(o_ref.dtype)


def flash_attention_pallas(q, k, v, *, n_head, block_size=128):
    """Causal multi-head attention on (B, T, C) tensors, heads fused in-kernel.

    q/k/v/y stay in (B, T, C) layout so no head split/merge transposes are
    needed outside the kernel. block_size=128 is MXU-friendly on all gens;
    256 is viable on v6e/v7x (2x256^2 MXU) with bf16 operands.
    """
    B, T, C = q.shape
    assert C % n_head == 0
    hs = C // n_head
    blk = min(block_size, _round_up(T, 8))
    Tp = _round_up(T, blk)
    if Tp != T:
        # Padded key rows sit strictly above the causal diagonal for every
        # real query (masked); padded query rows are sliced off at the end.
        pad = ((0, 0), (0, Tp - T), (0, 0))
        q, k, v = jnp.pad(q, pad), jnp.pad(k, pad), jnp.pad(v, pad)

    scale = 1.0 / math.sqrt(hs)
    nblk = Tp // blk
    kernel = functools.partial(_flash_kernel, scale=scale, blk=blk,
                               n_head=n_head, hs=hs)
    itemsize = q.dtype.itemsize

    # K/V index_map clamped to the causal bound: above-diagonal steps revisit
    # the same block, so no HBM->VMEM DMA is issued for skipped work.
    kv_spec = pl.BlockSpec((1, blk, C),
                           lambda b, qi, ki: (b, jnp.minimum(ki, qi), 0))

    flops = 2 * B * C * Tp * (Tp + blk)                    # causal ~halves work
    kv_bytes = B * Tp * C * (nblk + 1) * itemsize          # K + V re-reads
    out = pl.pallas_call(
        kernel,
        out_shape=jax.ShapeDtypeStruct((B, Tp, C), q.dtype),
        grid_spec=pltpu.PrefetchScalarGridSpec(
            num_scalar_prefetch=0,
            grid=(B, nblk, nblk),
            in_specs=[
                pl.BlockSpec((1, blk, C), lambda b, qi, ki: (b, qi, 0)),
                kv_spec,
                kv_spec,
            ],
            out_specs=pl.BlockSpec((1, blk, C), lambda b, qi, ki: (b, qi, 0)),
            scratch_shapes=[
                pltpu.VMEM((blk, n_head), jnp.float32),   # running max
                pltpu.VMEM((blk, n_head), jnp.float32),   # running denom
                pltpu.VMEM((blk, C), jnp.float32),        # output accumulator
            ],
        ),
        compiler_params=pltpu.CompilerParams(
            dimension_semantics=("parallel", "parallel", "arbitrary")),
        cost_estimate=pl.CostEstimate(
            flops=flops,
            transcendentals=B * n_head * Tp * (Tp + blk) // 2,
            bytes_accessed=2 * B * Tp * C * itemsize + kv_bytes),
    )(q, k, v)

    return out if Tp == T else out[:, :T, :]


# ---------------------------------------------------------------------------
# Full module forward: fused qkv proj -> causal SDPA -> out proj
# ---------------------------------------------------------------------------
def flash_att_forward(x, w_qkv, b_qkv, w_proj, b_proj, *, n_head,
                      compute_dtype=None):
    """compute_dtype=jnp.bfloat16 feeds the MXU bf16 operands (softmax state
    and accumulators stay f32); None keeps everything in x.dtype."""
    B, T, C = x.shape
    assert C % n_head == 0
    cdt = x.dtype if compute_dtype is None else jnp.dtype(compute_dtype)

    # Fused QKV projection writes q/k/v directly in (B*T, C) layout, so the
    # (B, T, C) views below are free reshapes — no head split/merge transposes
    # (full HBM passes) anywhere in the forward.
    x2 = x.reshape(B * T, C).astype(cdt)
    q, k, v = qkv_proj_pallas(x2, w_qkv.astype(cdt), b_qkv)
    q = q.reshape(B, T, C)
    k = k.reshape(B, T, C)
    v = v.reshape(B, T, C)

    y = flash_attention_pallas(q, k, v, n_head=n_head)            # (B, T, C)

    out = linear_pallas(y.reshape(B * T, C), w_proj.astype(cdt), b_proj,
                        out_dtype=x.dtype)
    # att_dropout / attention dropout: identity at inference.
    # TODO(synk): stochastic dropout via pltpu.prng_random_bits if
    # training-mode semantics are ever required.
    return out.reshape(B, T, C)


# ---------------------------------------------------------------------------
# Pure-JAX reference
# ---------------------------------------------------------------------------
def flash_att_reference(x, w_qkv, b_qkv, w_proj, b_proj, *, n_head):
    B, T, C = x.shape
    hs = C // n_head
    qkv = x @ w_qkv + b_qkv
    q, k, v = jnp.split(qkv, 3, axis=-1)
    q = q.reshape(B, T, n_head, hs).transpose(0, 2, 1, 3)
    k = k.reshape(B, T, n_head, hs).transpose(0, 2, 1, 3)
    v = v.reshape(B, T, n_head, hs).transpose(0, 2, 1, 3)
    s = jnp.einsum("bhqd,bhkd->bhqk", q, k) / math.sqrt(hs)
    mask = jnp.tril(jnp.ones((T, T), dtype=bool))
    s = jnp.where(mask, s, -jnp.inf)
    p = jax.nn.softmax(s, axis=-1)
    y = jnp.einsum("bhqk,bhkd->bhqd", p, v)
    y = y.transpose(0, 2, 1, 3).reshape(B, T, C)
    return y @ w_proj + b_proj


if __name__ == "__main__":
    # Small config consistent with the module: n_embed=32, n_head=4,
    # head_size=8, bias=True, dropout=0 (inference).
    B, T, C, NH = 2, 8, 32, 4

    key = jax.random.PRNGKey(0)
    kx, k1, k2, k3, k4 = jax.random.split(key, 5)
    x = jax.random.normal(kx, (B, T, C), dtype=jnp.float32)
    w_qkv = jax.random.uniform(k1, (C, 3 * C), jnp.float32, -1.0, 1.0) / math.sqrt(C)
    b_qkv = jax.random.uniform(k2, (3 * C,), jnp.float32, -1.0, 1.0) / math.sqrt(C)
    w_proj = jax.random.uniform(k3, (C, C), jnp.float32, -1.0, 1.0) / math.sqrt(C)
    b_proj = jax.random.uniform(k4, (C,), jnp.float32, -1.0, 1.0) / math.sqrt(C)

    ref = flash_att_reference(x, w_qkv, b_qkv, w_proj, b_proj, n_head=NH)

    # Full-precision path.
    out = flash_att_forward(x, w_qkv, b_qkv, w_proj, b_proj, n_head=NH)
    out = jax.block_until_ready(out)
    assert out.shape == (B, T, C)
    assert jnp.allclose(out, ref, atol=5e-3, rtol=5e-3), "f32 mismatch vs reference"

    # bf16 MXU-operand path (online-softmax state stays f32).
    out_bf16 = flash_att_forward(x, w_qkv, b_qkv, w_proj, b_proj, n_head=NH,
                                 compute_dtype=jnp.bfloat16)
    out_bf16 = jax.block_until_ready(out_bf16)
    assert out_bf16.shape == (B, T, C) and out_bf16.dtype == x.dtype
    assert jnp.allclose(out_bf16, ref, atol=5e-2, rtol=5e-2), "bf16 mismatch vs reference"

    print("KERNEL_OK")
</pallas_src>

<mosaic_0001>
module attributes {stable_mosaic.version = 11 : i64} {
  func.func @_qkv_proj_kernel(%arg0: i32, %arg1: i32, %arg2: i32, %arg3: memref<16x128xf32, #tpu.memory_space<vmem>>, %arg4: memref<128x128xf32, #tpu.memory_space<vmem>>, %arg5: memref<128x128xf32, #tpu.memory_space<vmem>>, %arg6: memref<128x128xf32, #tpu.memory_space<vmem>>, %arg7: memref<1x128xf32, #tpu.memory_space<vmem>>, %arg8: memref<1x128xf32, #tpu.memory_space<vmem>>, %arg9: memref<1x128xf32, #tpu.memory_space<vmem>>, %arg10: memref<16x128xf32, #tpu.memory_space<vmem>>, %arg11: memref<16x128xf32, #tpu.memory_space<vmem>>, %arg12: memref<16x128xf32, #tpu.memory_space<vmem>>, %arg13: memref<16x128xf32, #tpu.memory_space<vmem>>, %arg14: memref<16x128xf32, #tpu.memory_space<vmem>>, %arg15: memref<16x128xf32, #tpu.memory_space<vmem>>) attributes {dimension_semantics = [#tpu.dimension_semantics<parallel>, #tpu.dimension_semantics<parallel>, #tpu.dimension_semantics<arbitrary>], iteration_bounds = array<i64: 1, 1, 1>, scalar_prefetch = 0 : i64, scratch_operands = 3 : i64, tpu.core_type = #tpu.core_type<tc>, window_params = [{transform_indices = @transform_0, window_bounds = array<i64: 16, 128>}, {transform_indices = @transform_1, window_bounds = array<i64: 128, 128>}, {transform_indices = @transform_2, window_bounds = array<i64: 128, 128>}, {transform_indices = @transform_3, window_bounds = array<i64: 128, 128>}, {transform_indices = @transform_4, window_bounds = array<i64: 1, 128>}, {transform_indices = @transform_5, window_bounds = array<i64: 1, 128>}, {transform_indices = @transform_6, window_bounds = array<i64: 1, 128>}, {transform_indices = @transform_7, window_bounds = array<i64: 16, 128>}, {transform_indices = @transform_8, window_bounds = array<i64: 16, 128>}, {transform_indices = @transform_9, window_bounds = array<i64: 16, 128>}]} {
    %c0_i32 = arith.constant 0 : i32
    %0 = arith.cmpi eq, %arg2, %c0_i32 : i32
    %1 = arith.extui %0 : i1 to i32
    %c0_i32_0 = arith.constant 0 : i32
    %2 = arith.cmpi ne, %1, %c0_i32_0 : i32
    scf.if %2 {
      %cst_24 = arith.constant 0.000000e+00 : f32
      %22 = vector.broadcast %cst_24 : f32 to vector<16x128xf32>
      %c0_25 = arith.constant 0 : index
      %c0_26 = arith.constant 0 : index
      %23 = vector.load %arg13[%c0_25, %c0_26] : memref<16x128xf32, #tpu.memory_space<vmem>>, vector<16x128xf32>
      tpu.vector_store %arg13[%c0_25, %c0_26], %22 {strides = array<i32>} : memref<16x128xf32, #tpu.memory_space<vmem>>, vector<16x128xf32>,
      %cst_27 = arith.constant 0.000000e+00 : f32
      %24 = vector.broadcast %cst_27 : f32 to vector<16x128xf32>
      %c0_28 = arith.constant 0 : index
      %c0_29 = arith.constant 0 : index
      %25 = vector.load %arg14[%c0_28, %c0_29] : memref<16x128xf32, #tpu.memory_space<vmem>>, vector<16x128xf32>
      tpu.vector_store %arg14[%c0_28, %c0_29], %24 {strides = array<i32>} : memref<16x128xf32, #tpu.memory_space<vmem>>, vector<16x128xf32>,
      %cst_30 = arith.constant 0.000000e+00 : f32
      %26 = vector.broadcast %cst_30 : f32 to vector<16x128xf32>
      %c0_31 = arith.constant 0 : index
      %c0_32 = arith.constant 0 : index
      %27 = vector.load %arg15[%c0_31, %c0_32] : memref<16x128xf32, #tpu.memory_space<vmem>>, vector<16x128xf32>
      tpu.vector_store %arg15[%c0_31, %c0_32], %26 {strides = array<i32>} : memref<16x128xf32, #tpu.memory_space<vmem>>, vector<16x128xf32>,
    } else {
    }
    %c0 = arith.constant 0 : index
    %c0_1 = arith.constant 0 : index
    %3 = vector.load %arg3[%c0, %c0_1] : memref<16x128xf32, #tpu.memory_space<vmem>>, vector<16x128xf32>
    %c0_2 = arith.constant 0 : index
    %c0_3 = arith.constant 0 : index
    %4 = vector.load %arg13[%c0_2, %c0_3] : memref<16x128xf32, #tpu.memory_space<vmem>>, vector<16x128xf32>
    %c0_4 = arith.constant 0 : index
    %c0_5 = arith.constant 0 : index
    %5 = vector.load %arg4[%c0_4, %c0_5] : memref<128x128xf32, #tpu.memory_space<vmem>>, vector<128x128xf32>
    %cst = arith.constant dense<0.000000e+00> : vector<16x128xf32>
    %6 = tpu.matmul %3, %5, %cst {dimension_numbers = #tpu.dot_dimension_numbers<[1], [0], [0], [1], [0, 0, 1, 1], [], []>} : vector<16x128xf32>, vector<128x128xf32>, vector<16x128xf32> -> vector<16x128xf32>
    %7 = arith.addf %4, %6 : vector<16x128xf32>
    %c0_6 = arith.constant 0 : index
    %c0_7 = arith.constant 0 : index
    %8 = vector.load %arg13[%c0_6, %c0_7] : memref<16x128xf32, #tpu.memory_space<vmem>>, vector<16x128xf32>
    tpu.vector_store %arg13[%c0_6, %c0_7], %7 {strides = array<i32>} : memref<16x128xf32, #tpu.memory_space<vmem>>, vector<16x128xf32>,
    %c0_8 = arith.constant 0 : index
    %c0_9 = arith.constant 0 : index
    %9 = vector.load %arg14[%c0_8, %c0_9] : memref<16x128xf32, #tpu.memory_space<vmem>>, vector<16x128xf32>
    %c0_10 = arith.constant 0 : index
    %c0_11 = arith.constant 0 : index
    %10 = vector.load %arg5[%c0_10, %c0_11] : memref<128x128xf32, #tpu.memory_space<vmem>>, vector<128x128xf32>
    %cst_12 = arith.constant dense<0.000000e+00> : vector<16x128xf32>
    %11 = tpu.matmul %3, %10, %cst_12 {dimension_numbers = #tpu.dot_dimension_numbers<[1], [0], [0], [1], [0, 0, 1, 1], [], []>} : vector<16x128xf32>, vector<128x128xf32>, vector<16x128xf32> -> vector<16x128xf32>
    %12 = arith.addf %9, %11 : vector<16x128xf32>
    %c0_13 = arith.constant 0 : index
    %c0_14 = arith.constant 0 : index
    %13 = vector.load %arg14[%c0_13, %c0_14] : memref<16x128xf32, #tpu.memory_space<vmem>>, vector<16x128xf32>
    tpu.vector_store %arg14[%c0_13, %c0_14], %12 {strides = array<i32>} : memref<16x128xf32, #tpu.memory_space<vmem>>, vector<16x128xf32>,
    %c0_15 = arith.constant 0 : index
    %c0_16 = arith.constant 0 : index
    %14 = vector.load %arg15[%c0_15, %c0_16] : memref<16x128xf32, #tpu.memory_space<vmem>>, vector<16x128xf32>
    %c0_17 = arith.constant 0 : index
    %c0_18 = arith.constant 0 : index
    %15 = vector.load %arg6[%c0_17, %c0_18] : memref<128x128xf32, #tpu.memory_space<vmem>>, vector<128x128xf32>
    %cst_19 = arith.constant dense<0.000000e+00> : vector<16x128xf32>
    %16 = tpu.matmul %3, %15, %cst_19 {dimension_numbers = #tpu.dot_dimension_numbers<[1], [0], [0], [1], [0, 0, 1, 1], [], []>} : vector<16x128xf32>, vector<128x128xf32>, vector<16x128xf32> -> vector<16x128xf32>
    %17 = arith.addf %14, %16 : vector<16x128xf32>
    %c0_20 = arith.constant 0 : index
    %c0_21 = arith.constant 0 : index
    %18 = vector.load %arg15[%c0_20, %c0_21] : memref<16x128xf32, #tpu.memory_space<vmem>>, vector<16x128xf32>
    tpu.vector_store %arg15[%c0_20, %c0_21], %17 {strides = array<i32>} : memref<16x128xf32, #tpu.memory_space<vmem>>, vector<16x128xf32>,
    %c0_i32_22 = arith.constant 0 : i32
    %19 = arith.cmpi eq, %arg2, %c0_i32_22 : i32
    %20 = arith.extui %19 : i1 to i32
    %c0_i32_23 = arith.constant 0 : i32
    %21 = arith.cmpi ne, %20, %c0_i32_23 : i32
    scf.if %21 {
      %c0_24 = arith.constant 0 : index
      %c0_25 = arith.constant 0 : index
      %22 = vector.load %arg13[%c0_24, %c0_25] : memref<16x128xf32, #tpu.memory_space<vmem>>, vector<16x128xf32>
      %c0_26 = arith.constant 0 : index
      %c0_27 = arith.constant 0 : index
      %23 = vector.load %arg7[%c0_26, %c0_27] : memref<1x128xf32, #tpu.memory_space<vmem>>, vector<1x128xf32>
      %24 = vector.broadcast %23 : vector<1x128xf32> to vector<16x128xf32>
      %25 = arith.addf %22, %24 : vector<16x128xf32>
      %c0_28 = arith.constant 0 : index
      %c0_29 = arith.constant 0 : index
      %26 = vector.load %arg10[%c0_28, %c0_29] : memref<16x128xf32, #tpu.memory_space<vmem>>, vector<16x128xf32>
      tpu.vector_store %arg10[%c0_28, %c0_29], %25 {strides = array<i32>} : memref<16x128xf32, #tpu.memory_space<vmem>>, vector<16x128xf32>,
      %c0_30 = arith.constant 0 : index
      %c0_31 = arith.constant 0 : index
      %27 = vector.load %arg14[%c0_30, %c0_31] : memref<16x128xf32, #tpu.memory_space<vmem>>, vector<16x128xf32>
      %c0_32 = arith.constant 0 : index
      %c0_33 = arith.constant 0 : index
      %28 = vector.load %arg8[%c0_32, %c0_33] : memref<1x128xf32, #tpu.memory_space<vmem>>, vector<1x128xf32>
      %29 = vector.broadcast %28 : vector<1x128xf32> to vector<16x128xf32>
      %30 = arith.addf %27, %29 : vector<16x128xf32>
      %c0_34 = arith.constant 0 : index
      %c0_35 = arith.constant 0 : index
      %31 = vector.load %arg11[%c0_34, %c0_35] : memref<16x128xf32, #tpu.memory_space<vmem>>, vector<16x128xf32>
      tpu.vector_store %arg11[%c0_34, %c0_35], %30 {strides = array<i32>} : memref<16x128xf32, #tpu.memory_space<vmem>>, vector<16x128xf32>,
      %c0_36 = arith.constant 0 : index
      %c0_37 = arith.constant 0 : index
      %32 = vector.load %arg15[%c0_36, %c0_37] : memref<16x128xf32, #tpu.memory_space<vmem>>, vector<16x128xf32>
      %c0_38 = arith.constant 0 : index
      %c0_39 = arith.constant 0 : index
      %33 = vector.load %arg9[%c0_38, %c0_39] : memref<1x128xf32, #tpu.memory_space<vmem>>, vector<1x128xf32>
      %34 = vector.broadcast %33 : vector<1x128xf32> to vector<16x128xf32>
      %35 = arith.addf %32, %34 : vector<16x128xf32>
      %c0_40 = arith.constant 0 : index
      %c0_41 = arith.constant 0 : index
      %36 = vector.load %arg12[%c0_40, %c0_41] : memref<16x128xf32, #tpu.memory_space<vmem>>, vector<16x128xf32>
      tpu.vector_store %arg12[%c0_40, %c0_41], %35 {strides = array<i32>} : memref<16x128xf32, #tpu.memory_space<vmem>>, vector<16x128xf32>,
    } else {
    }
    return
  }
  func.func @transform_0(%arg0: i32, %arg1: i32, %arg2: i32) -> (i32, i32) {
    %c0_i32 = arith.constant 0 : i32
    return %arg0, %arg2 : i32, i32
  }
  func.func @transform_1(%arg0: i32, %arg1: i32, %arg2: i32) -> (i32, i32) {
    %c0_i32 = arith.constant 0 : i32
    return %arg2, %arg1 : i32, i32
  }
  func.func @transform_2(%arg0: i32, %arg1: i32, %arg2: i32) -> (i32, i32) {
    %c0_i32 = arith.constant 0 : i32
    return %arg2, %arg1 : i32, i32
  }
  func.func @transform_3(%arg0: i32, %arg1: i32, %arg2: i32) -> (i32, i32) {
    %c0_i32 = arith.constant 0 : i32
    return %arg2, %arg1 : i32, i32
  }
  func.func @transform_4(%arg0: i32, %arg1: i32, %arg2: i32) -> (i32, i32) {
    %c0_i32 = arith.constant 0 : i32
    %c0_i32_0 = arith.constant 0 : i32
    return %c0_i32, %arg1 : i32, i32
  }
  func.func @transform_5(%arg0: i32, %arg1: i32, %arg2: i32) -> (i32, i32) {
    %c0_i32 = arith.constant 0 : i32
    %c0_i32_0 = arith.constant 0 : i32
    return %c0_i32, %arg1 : i32, i32
  }
  func.func @transform_6(%arg0: i32, %arg1: i32, %arg2: i32) -> (i32, i32) {
    %c0_i32 = arith.constant 0 : i32
    %c0_i32_0 = arith.constant 0 : i32
    return %c0_i32, %arg1 : i32, i32
  }
  func.func @transform_7(%arg0: i32, %arg1: i32, %arg2: i32) -> (i32, i32) {
    %c0_i32 = arith.constant 0 : i32
    return %arg0, %arg1 : i32, i32
  }
  func.func @transform_8(%arg0: i32, %arg1: i32, %arg2: i32) -> (i32, i32) {
    %c0_i32 = arith.constant 0 : i32
    return %arg0, %arg1 : i32, i32
  }
  func.func @transform_9(%arg0: i32, %arg1: i32, %arg2: i32) -> (i32, i32) {
    %c0_i32 = arith.constant 0 : i32
    return %arg0, %arg1 : i32, i32
  }
}

</mosaic_0001>

<llo_original>
// kernel: tpu_custom_call.1
$region0: #{tpu_custom_call.1}
  #allocation0 [shape = 'u32[]', space=smem, size = 0x4, offset = 0x4, fixed_abs, tag = 'smem constant byte address 0x4 - core index']
  #allocation1 [shape = 'u32[144,128]{1,0:T(1,128)}', space=vmem, size = 0x12000, scoped, tag = 'internal scratch']
  #allocation2 [shape = 'f32[16,128]{1,0:T(8,128)}', space=vmem, size = 0x2000, scoped, tag = 'scratch operand']
  #allocation3 [shape = 'f32[16,128]{1,0:T(8,128)}', space=vmem, size = 0x2000, scoped, tag = 'scratch operand']
  #allocation4 [shape = 'f32[16,128]{1,0:T(8,128)}', space=vmem, size = 0x2000, scoped, tag = 'scratch operand']
  %s0 = inlined_call_operand.hbm [shape: f32[16,128], index: 0, kind: input, shape index: {}]
  %s1 = inlined_call_operand.hbm [shape: f32[128,128], index: 1, kind: input, shape index: {}]
  %s2 = inlined_call_operand.hbm [shape: f32[128,128], index: 2, kind: input, shape index: {}]
  %s3 = inlined_call_operand.hbm [shape: f32[128,128], index: 3, kind: input, shape index: {}]
  %s4 = inlined_call_operand.vmem [shape: f32[1,128], index: 4, kind: input, shape index: {}]
  %s5 = inlined_call_operand.vmem [shape: f32[1,128], index: 5, kind: input, shape index: {}]
  %s6 = inlined_call_operand.vmem [shape: f32[1,128], index: 6, kind: input, shape index: {}]
  %s7 = inlined_call_operand.hbm [shape: f32[16,128], index: 7, kind: output, shape index: {0}]
  %s8 = inlined_call_operand.hbm [shape: f32[16,128], index: 8, kind: output, shape index: {1}]
  %s9 = inlined_call_operand.hbm [shape: f32[16,128], index: 9, kind: output, shape index: {2}]
  %10 = xla_tuple %s7, %s8, %s9
  %s11 = sld [smem:[#allocation0]]
  $region78: #{tpu_custom_call.1} parent=0
    _
  %s13 = ssub.s32 1, %s11
  %s14 = scalar_select 0, %s13, %s11
  $region1: #{tpu_custom_call.1} parent=0
    #allocation5 [shape = 'u8[8192]{0}', space=vmem, size = 0x2000, scoped, tag = 'input window, operand 0, single buffered']
    #allocation6 [shape = 's32[1]{0}', space=sflag, size = 0x4, scoped, tag = 'scoped memory for tpu_custom_call.1']
    #allocation7 [shape = 's32[1]{0}', space=sflag, size = 0x4, scoped, tag = 'scoped memory for tpu_custom_call.1']
    #allocation8 [shape = 'u8[65536]{0}', space=vmem, size = 0x10000, scoped, tag = 'input window, operand 1, single buffered']
    #allocation9 [shape = 's32[1]{0}', space=sflag, size = 0x4, scoped, tag = 'scoped memory for tpu_custom_call.1']
    #allocation10 [shape = 'u8[65536]{0}', space=vmem, size = 0x10000, scoped, tag = 'input window, operand 2, single buffered']
    #allocation11 [shape = 'u8[65536]{0}', space=vmem, size = 0x10000, scoped, tag = 'input window, operand 3, single buffered']
    #allocation12 [shape = 's32[1]{0}', space=sflag, size = 0x4, scoped, tag = 'scoped memory for tpu_custom_call.1']
    #allocation13 [shape = 'u8[8192]{0}', space=vmem, size = 0x2000, scoped, tag = 'output window, operand 0, single buffered']
    #allocation14 [shape = 'u8[8192]{0}', space=vmem, size = 0x2000, scoped, tag = 'output window, operand 1, single buffered']
    #allocation15 [shape = 's32[1]{0}', space=sflag, size = 0x4, scoped, tag = 'scoped memory for tpu_custom_call.1']
    #allocation16 [shape = 'u8[8192]{0}', space=vmem, size = 0x2000, scoped, tag = 'output window, operand 2, single buffered']
    %15 = vsyncpa [#allocation6], 0
    %16 = vsyncpa [#allocation9], 0
    %17 = vsyncpa [#allocation12], 0
    %18 = vsyncpa [#allocation7], 0
    %19 = vsyncpa [#allocation15], 0
    // Predicated region
    $region2: #{tpu_custom_call.1} parent=1 // pred_check
      _
    $region3: #{tpu_custom_call.1} parent=1 // pred_check_branch
      %21 = sbr.rel (0) target = $region5
    $region4: #{tpu_custom_call.1} parent=1 // pred_region
      %s23 = ssub.s32 256, 256
      %24 = vsyncadd [#allocation6], %s23
      %s25 = sshll.u32 [#allocation5], 4
      %s26 = int_to_ptr.vmem [resolvable:$true] %s25
      %31 = dma.hbm_to_vmem [thread:$0]  %s0, 256, %s26, [#allocation6], 128, 128, 8
    $region5: #{tpu_custom_call.1} parent=1 // pred_fallthru
      _
    // Predicated region
    $region6: #{tpu_custom_call.1} parent=1 // pred_check
      _
    $region7: #{tpu_custom_call.1} parent=1 // pred_check_branch
      %33 = sbr.rel (0) target = $region9
    $region8: #{tpu_custom_call.1} parent=1 // pred_region
      %s35 = ssub.s32 2048, 2048
      %36 = vsyncadd [#allocation9], %s35
      %s37 = sshll.u32 [#allocation8], 4
      %s38 = int_to_ptr.vmem [resolvable:$true] %s37
      %43 = dma.hbm_to_vmem [thread:$0]  %s1, 2048, %s38, [#allocation9], 128, 128, 8
    $region9: #{tpu_custom_call.1} parent=1 // pred_fallthru
      _
    // Predicated region
    $region10: #{tpu_custom_call.1} parent=1 // pred_check
      _
    $region11: #{tpu_custom_call.1} parent=1 // pred_check_branch
      %45 = sbr.rel (0) target = $region13
    $region12: #{tpu_custom_call.1} parent=1 // pred_region
      %s47 = ssub.s32 2048, 2048
      %48 = vsyncadd [#allocation9], %s47
      %s49 = sshll.u32 [#allocation10], 4
      %s50 = int_to_ptr.vmem [resolvable:$true] %s49
      %55 = dma.hbm_to_vmem [thread:$0]  %s2, 2048, %s50, [#allocation9], 128, 128, 8
    $region13: #{tpu_custom_call.1} parent=1 // pred_fallthru
      _
    // Predicated region
    $region14: #{tpu_custom_call.1} parent=1 // pred_check
      _
    $region15: #{tpu_custom_call.1} parent=1 // pred_check_branch
      %57 = sbr.rel (0) target = $region17
    $region16: #{tpu_custom_call.1} parent=1 // pred_region
      %s59 = ssub.s32 2048, 2048
      %60 = vsyncadd [#allocation12], %s59
      %s61 = sshll.u32 [#allocation11], 4
      %s62 = int_to_ptr.vmem [resolvable:$true] %s61
      %67 = dma.hbm_to_vmem [thread:$0]  %s3, 2048, %s62, [#allocation12], 128, 128, 8
    $region17: #{tpu_custom_call.1} parent=1 // pred_fallthru
      _
    // Predicated region
    $region18: #{tpu_custom_call.1} parent=1 // pred_check
      _
    $region19: #{tpu_custom_call.1} parent=1 // pred_check_branch
      %69 = sbr.rel (0) target = $region21
    $region20: #{tpu_custom_call.1} parent=1 // pred_region
      _
    $region21: #{tpu_custom_call.1} parent=1 // pred_fallthru
      _
    // Predicated region
    $region22: #{tpu_custom_call.1} parent=1 // pred_check
      _
    $region23: #{tpu_custom_call.1} parent=1 // pred_check_branch
      %71 = sbr.rel (0) target = $region25
    $region24: #{tpu_custom_call.1} parent=1 // pred_region
      _
    $region25: #{tpu_custom_call.1} parent=1 // pred_fallthru
      _
    // Predicated region
    $region26: #{tpu_custom_call.1} parent=1 // pred_check
      _
    $region27: #{tpu_custom_call.1} parent=1 // pred_check_branch
      %73 = sbr.rel (0) target = $region29
    $region28: #{tpu_custom_call.1} parent=1 // pred_region
      _
    $region29: #{tpu_custom_call.1} parent=1 // pred_fallthru
      _
    // Predicated region
    $region30: #{tpu_custom_call.1} parent=1 // pred_check
      _
    $region31: #{tpu_custom_call.1} parent=1 // pred_check_branch
      %75 = sbr.rel (0) target = $region33
    $region32: #{tpu_custom_call.1} parent=1 // pred_region
      %76 = dma.done [#allocation6], 256
    $region33: #{tpu_custom_call.1} parent=1 // pred_fallthru
      _
    // Predicated region
    $region34: #{tpu_custom_call.1} parent=1 // pred_check
      _
    $region35: #{tpu_custom_call.1} parent=1 // pred_check_branch
      %78 = sbr.rel (0) target = $region37
    $region36: #{tpu_custom_call.1} parent=1 // pred_region
      %79 = dma.done [#allocation9], 2048
    $region37: #{tpu_custom_call.1} parent=1 // pred_fallthru
      _
    // Predicated region
    $region38: #{tpu_custom_call.1} parent=1 // pred_check
      _
    $region39: #{tpu_custom_call.1} parent=1 // pred_check_branch
      %81 = sbr.rel (0) target = $region41
    $region40: #{tpu_custom_call.1} parent=1 // pred_region
      %82 = dma.done [#allocation9], 2048
    $region41: #{tpu_custom_call.1} parent=1 // pred_fallthru
      _
    // Predicated region
    $region42: #{tpu_custom_call.1} parent=1 // pred_check
      _
    $region43: #{tpu_custom_call.1} parent=1 // pred_check_branch
      %84 = sbr.rel (0) target = $region45
    $region44: #{tpu_custom_call.1} parent=1 // pred_region
      %85 = dma.done [#allocation12], 2048
    $region45: #{tpu_custom_call.1} parent=1 // pred_fallthru
      _
    %p86 = scmp.eq.s32.totalorder 0, 0
    // Predicated region
    $region46: #{tpu_custom_call.1} parent=1 // pred_check
      %p87 = pneg %p86
    $region47: #{tpu_custom_call.1} parent=1 // pred_check_branch
      %89 = sbr.rel (%p87) target = $region49
    $region48: #{tpu_custom_call.1} parent=1 // pred_region
      %90 = vst [vmem:[#allocation2] sm:$0xff] 0.0
      %91 = vst [vmem:[#allocation2 + $0x8] sm:$0xff] 0.0
      %92 = vst [vmem:[#allocation3] sm:$0xff] 0.0
      %93 = vst [vmem:[#allocation3 + $0x8] sm:$0xff] 0.0
      %94 = vst [vmem:[#allocation4] sm:$0xff] 0.0
      %95 = vst [vmem:[#allocation4 + $0x8] sm:$0xff] 0.0
    $region49: #{tpu_custom_call.1} parent=1 // pred_fallthru
      _
    %v96 = vld [vmem:[#allocation5] sm:$0xff]
    %v97 = vld [vmem:[#allocation5 + $0x8] sm:$0xff]
    %v98 = vld [vmem:[#allocation2] sm:$0xff]
    %v99 = vld [vmem:[#allocation2 + $0x8] sm:$0xff]
    %v100 = vld [vmem:[#allocation8] sm:$0xff]
    %v101 = vld [vmem:[#allocation8 + $0x8] sm:$0xff]
    %v102 = vld [vmem:[#allocation8 + $0x10] sm:$0xff]
    %v103 = vld [vmem:[#allocation8 + $0x18] sm:$0xff]
    %v104 = vld [vmem:[#allocation8 + $0x20] sm:$0xff]
    %v105 = vld [vmem:[#allocation8 + $0x28] sm:$0xff]
    %v106 = vld [vmem:[#allocation8 + $0x30] sm:$0xff]
    %v107 = vld [vmem:[#allocation8 + $0x38] sm:$0xff]
    %v108 = vld [vmem:[#allocation8 + $0x40] sm:$0xff]
    %v109 = vld [vmem:[#allocation8 + $0x48] sm:$0xff]
    %v110 = vld [vmem:[#allocation8 + $0x50] sm:$0xff]
    %v111 = vld [vmem:[#allocation8 + $0x58] sm:$0xff]
    %v112 = vld [vmem:[#allocation8 + $0x60] sm:$0xff]
    %v113 = vld [vmem:[#allocation8 + $0x68] sm:$0xff]
    %v114 = vld [vmem:[#allocation8 + $0x70] sm:$0xff]
    %v115 = vld [vmem:[#allocation8 + $0x78] sm:$0xff]
    %116 = vmatprep.subr.mxu0 0.0
    %117 = vmatpush1.msra.mxu0 %v115
    %118 = vmatprep.subr.mxu0 0.0
    %119 = vmatpush1.msra.mxu0 %v114
    %120 = vmatprep.subr.mxu0 0.0
    %121 = vmatpush1.msra.mxu0 %v113
    %122 = vmatprep.subr.mxu0 0.0
    %123 = vmatpush1.msra.mxu0 %v112
    %124 = vmatprep.subr.mxu0 0.0
    %125 = vmatpush1.msra.mxu0 %v111
    %126 = vmatprep.subr.mxu0 0.0
    %127 = vmatpush1.msra.mxu0 %v110
    %128 = vmatprep.subr.mxu0 0.0
    %129 = vmatpush1.msra.mxu0 %v109
    %130 = vmatprep.subr.mxu0 0.0
    %131 = vmatpush1.msra.mxu0 %v108
    %132 = vmatprep.subr.mxu0 0.0
    %133 = vmatpush1.msra.mxu0 %v107
    %134 = vmatprep.subr.mxu0 0.0
    %135 = vmatpush1.msra.mxu0 %v106
    %136 = vmatprep.subr.mxu0 0.0
    %137 = vmatpush1.msra.mxu0 %v105
    %138 = vmatprep.subr.mxu0 0.0
    %139 = vmatpush1.msra.mxu0 %v104
    %140 = vmatprep.subr.mxu0 0.0
    %141 = vmatpush1.msra.mxu0 %v103
    %142 = vmatprep.subr.mxu0 0.0
    %143 = vmatpush1.msra.mxu0 %v102
    %144 = vmatprep.subr.mxu0 0.0
    %145 = vmatpush1.msra.mxu0 %v101
    %146 = vmatprep.subr.mxu0 0.0
    %147 = vmatpush1.msra.mxu0 %v100
    %148 = vmatprep.subr.mxu0 0.0
    %149 = vmatpush2.msra.mxu0 0.0
    %150 = vmatprep.subr.mxu0 0.0
    %151 = vmatpush2.msra.mxu0 0.0
    %152 = vmatprep.subr.mxu0 0.0
    %153 = vmatpush2.msra.mxu0 0.0
    %154 = vmatprep.subr.mxu0 0.0
    %155 = vmatpush2.msra.mxu0 0.0
    %156 = vmatprep.subr.mxu0 0.0
    %157 = vmatpush2.msra.mxu0 0.0
    %158 = vmatprep.subr.mxu0 0.0
    %159 = vmatpush2.msra.mxu0 0.0
    %160 = vmatprep.subr.mxu0 0.0
    %161 = vmatpush2.msra.mxu0 0.0
    %162 = vmatprep.subr.mxu0 0.0
    %163 = vmatpush2.msra.mxu0 0.0
    %164 = vmatprep.subr.mxu0 0.0
    %165 = vmatpush2.msra.mxu0 0.0
    %166 = vmatprep.subr.mxu0 0.0
    %167 = vmatpush2.msra.mxu0 0.0
    %168 = vmatprep.subr.mxu0 0.0
    %169 = vmatpush2.msra.mxu0 0.0
    %170 = vmatprep.subr.mxu0 0.0
    %171 = vmatpush2.msra.mxu0 0.0
    %172 = vmatprep.subr.mxu0 0.0
    %173 = vmatpush2.msra.mxu0 0.0
    %174 = vmatprep.subr.mxu0 0.0
    %175 = vmatpush2.msra.mxu0 0.0
    %176 = vmatprep.subr.mxu0 0.0
    %177 = vmatpush2.msra.mxu0 0.0
    %178 = vmatprep.subr.mxu0 0.0
    %179 = vmatpush2.msra.mxu0 0.0
    %180 = vmatprep.mubr.f32.mxu0 0.0
    %181 = vmatmul.mubr.f32.gmra.mxu0 %v96
    %v182 = vpop.f32.mrf.mxu0
    %v183 = vadd.f32 0.0, %v182
    %v184 = vpop.f32.mrf.mxu0
    %185 = vmatprep.mubr.f32.mxu0 0.0
    %186 = vmatmul.mubr.f32.gmra.mxu0 %v97
    %v187 = vpop.f32.mrf.mxu0
    %v188 = vadd.f32 0.0, %v187
    %v189 = vpop.f32.mrf.mxu0
    %190 = vdwg.mxu0
    %v191 = vadd.f32 %v98, %v183
    %v192 = vadd.f32 %v99, %v188
    %193 = vst [vmem:[#allocation2] sm:$0xff] %v191
    %194 = vst [vmem:[#allocation2 + $0x8] sm:$0xff] %v192
    %v195 = vld [vmem:[#allocation3] sm:$0xff]
    %v196 = vld [vmem:[#allocation3 + $0x8] sm:$0xff]
    %v197 = vld [vmem:[#allocation10] sm:$0xff]
    %v198 = vld [vmem:[#allocation10 + $0x8] sm:$0xff]
    %v199 = vld [vmem:[#allocation10 + $0x10] sm:$0xff]
    %v200 = vld [vmem:[#allocation10 + $0x18] sm:$0xff]
    %v201 = vld [vmem:[#allocation10 + $0x20] sm:$0xff]
    %v202 = vld [vmem:[#allocation10 + $0x28] sm:$0xff]
    %v203 = vld [vmem:[#allocation10 + $0x30] sm:$0xff]
    %v204 = vld [vmem:[#allocation10 + $0x38] sm:$0xff]
    %v205 = vld [vmem:[#allocation10 + $0x40] sm:$0xff]
    %v206 = vld [vmem:[#allocation10 + $0x48] sm:$0xff]
    %v207 = vld [vmem:[#allocation10 + $0x50] sm:$0xff]
    %v208 = vld [vmem:[#allocation10 + $0x58] sm:$0xff]
    %v209 = vld [vmem:[#allocation10 + $0x60] sm:$0xff]
    %v210 = vld [vmem:[#allocation10 + $0x68] sm:$0xff]
    %v211 = vld [vmem:[#allocation10 + $0x70] sm:$0xff]
    %v212 = vld [vmem:[#allocation10 + $0x78] sm:$0xff]
    %213 = vmatprep.subr.mxu0 0.0
    %214 = vmatpush1.msra.mxu0 %v212
    %215 = vmatprep.subr.mxu0 0.0
    %216 = vmatpush1.msra.mxu0 %v211
    %217 = vmatprep.subr.mxu0 0.0
    %218 = vmatpush1.msra.mxu0 %v210
    %219 = vmatprep.subr.mxu0 0.0
    %220 = vmatpush1.msra.mxu0 %v209
    %221 = vmatprep.subr.mxu0 0.0
    %222 = vmatpush1.msra.mxu0 %v208
    %223 = vmatprep.subr.mxu0 0.0
    %224 = vmatpush1.msra.mxu0 %v207
    %225 = vmatprep.subr.mxu0 0.0
    %226 = vmatpush1.msra.mxu0 %v206
    %227 = vmatprep.subr.mxu0 0.0
    %228 = vmatpush1.msra.mxu0 %v205
    %229 = vmatprep.subr.mxu0 0.0
    %230 = vmatpush1.msra.mxu0 %v204
    %231 = vmatprep.subr.mxu0 0.0
    %232 = vmatpush1.msra.mxu0 %v203
    %233 = vmatprep.subr.mxu0 0.0
    %234 = vmatpush1.msra.mxu0 %v202
    %235 = vmatprep.subr.mxu0 0.0
    %236 = vmatpush1.msra.mxu0 %v201
    %237 = vmatprep.subr.mxu0 0.0
    %238 = vmatpush1.msra.mxu0 %v200
    %239 = vmatprep.subr.mxu0 0.0
    %240 = vmatpush1.msra.mxu0 %v199
    %241 = vmatprep.subr.mxu0 0.0
    %242 = vmatpush1.msra.mxu0 %v198
    %243 = vmatprep.subr.mxu0 0.0
    %244 = vmatpush1.msra.mxu0 %v197
    %245 = vmatprep.subr.mxu0 0.0
    %246 = vmatpush2.msra.mxu0 0.0
    %247 = vmatprep.subr.mxu0 0.0
    %248 = vmatpush2.msra.mxu0 0.0
    %249 = vmatprep.subr.mxu0 0.0
    %250 = vmatpush2.msra.mxu0 0.0
    %251 = vmatprep.subr.mxu0 0.0
    %252 = vmatpush2.msra.mxu0 0.0
    %253 = vmatprep.subr.mxu0 0.0
    %254 = vmatpush2.msra.mxu0 0.0
    %255 = vmatprep.subr.mxu0 0.0
    %256 = vmatpush2.msra.mxu0 0.0
    %257 = vmatprep.subr.mxu0 0.0
    %258 = vmatpush2.msra.mxu0 0.0
    %259 = vmatprep.subr.mxu0 0.0
    %260 = vmatpush2.msra.mxu0 0.0
    %261 = vmatprep.subr.mxu0 0.0
    %262 = vmatpush2.msra.mxu0 0.0
    %263 = vmatprep.subr.mxu0 0.0
    %264 = vmatpush2.msra.mxu0 0.0
    %265 = vmatprep.subr.mxu0 0.0
    %266 = vmatpush2.msra.mxu0 0.0
    %267 = vmatprep.subr.mxu0 0.0
    %268 = vmatpush2.msra.mxu0 0.0
    %269 = vmatprep.subr.mxu0 0.0
    %270 = vmatpush2.msra.mxu0 0.0
    %271 = vmatprep.subr.mxu0 0.0
    %272 = vmatpush2.msra.mxu0 0.0
    %273 = vmatprep.subr.mxu0 0.0
    %274 = vmatpush2.msra.mxu0 0.0
    %275 = vmatprep.subr.mxu0 0.0
    %276 = vmatpush2.msra.mxu0 0.0
    %277 = vmatprep.mubr.f32.mxu0 0.0
    %278 = vmatmul.mubr.f32.gmra.mxu0 %v96
    %v279 = vpop.f32.mrf.mxu0
    %v280 = vadd.f32 0.0, %v279
    %v281 = vpop.f32.mrf.mxu0
    %282 = vmatprep.mubr.f32.mxu0 0.0
    %283 = vmatmul.mubr.f32.gmra.mxu0 %v97
    %v284 = vpop.f32.mrf.mxu0
    %v285 = vadd.f32 0.0, %v284
    %v286 = vpop.f32.mrf.mxu0
    %287 = vdwg.mxu0
    %v288 = vadd.f32 %v195, %v280
    %v289 = vadd.f32 %v196, %v285
    %290 = vst [vmem:[#allocation3] sm:$0xff] %v288
    %291 = vst [vmem:[#allocation3 + $0x8] sm:$0xff] %v289
    %v292 = vld [vmem:[#allocation4] sm:$0xff]
    %v293 = vld [vmem:[#allocation4 + $0x8] sm:$0xff]
    %v294 = vld [vmem:[#allocation11] sm:$0xff]
    %v295 = vld [vmem:[#allocation11 + $0x8] sm:$0xff]
    %v296 = vld [vmem:[#allocation11 + $0x10] sm:$0xff]
    %v297 = vld [vmem:[#allocation11 + $0x18] sm:$0xff]
    %v298 = vld [vmem:[#allocation11 + $0x20] sm:$0xff]
    %v299 = vld [vmem:[#allocation11 + $0x28] sm:$0xff]
    %v300 = vld [vmem:[#allocation11 + $0x30] sm:$0xff]
    %v301 = vld [vmem:[#allocation11 + $0x38] sm:$0xff]
    %v302 = vld [vmem:[#allocation11 + $0x40] sm:$0xff]
    %v303 = vld [vmem:[#allocation11 + $0x48] sm:$0xff]
    %v304 = vld [vmem:[#allocation11 + $0x50] sm:$0xff]
    %v305 = vld [vmem:[#allocation11 + $0x58] sm:$0xff]
    %v306 = vld [vmem:[#allocation11 + $0x60] sm:$0xff]
    %v307 = vld [vmem:[#allocation11 + $0x68] sm:$0xff]
    %v308 = vld [vmem:[#allocation11 + $0x70] sm:$0xff]
    %v309 = vld [vmem:[#allocation11 + $0x78] sm:$0xff]
    %310 = vmatprep.subr.mxu0 0.0
    %311 = vmatpush1.msra.mxu0 %v309
    %312 = vmatprep.subr.mxu0 0.0
    %313 = vmatpush1.msra.mxu0 %v308
    %314 = vmatprep.subr.mxu0 0.0
    %315 = vmatpush1.msra.mxu0 %v307
    %316 = vmatprep.subr.mxu0 0.0
    %317 = vmatpush1.msra.mxu0 %v306
    %318 = vmatprep.subr.mxu0 0.0
    %319 = vmatpush1.msra.mxu0 %v305
    %320 = vmatprep.subr.mxu0 0.0
    %321 = vmatpush1.msra.mxu0 %v304
    %322 = vmatprep.subr.mxu0 0.0
    %323 = vmatpush1.msra.mxu0 %v303
    %324 = vmatprep.subr.mxu0 0.0
    %325 = vmatpush1.msra.mxu0 %v302
    %326 = vmatprep.subr.mxu0 0.0
    %327 = vmatpush1.msra.mxu0 %v301
    %328 = vmatprep.subr.mxu0 0.0
    %329 = vmatpush1.msra.mxu0 %v300
    %330 = vmatprep.subr.mxu0 0.0
    %331 = vmatpush1.msra.mxu0 %v299
    %332 = vmatprep.subr.mxu0 0.0
    %333 = vmatpush1.msra.mxu0 %v298
    %334 = vmatprep.subr.mxu0 0.0
    %335 = vmatpush1.msra.mxu0 %v297
    %336 = vmatprep.subr.mxu0 0.0
    %337 = vmatpush1.msra.mxu0 %v296
    %338 = vmatprep.subr.mxu0 0.0
    %339 = vmatpush1.msra.mxu0 %v295
    %340 = vmatprep.subr.mxu0 0.0
    %341 = vmatpush1.msra.mxu0 %v294
    %342 = vmatprep.subr.mxu0 0.0
    %343 = vmatpush2.msra.mxu0 0.0
    %344 = vmatprep.subr.mxu0 0.0
    %345 = vmatpush2.msra.mxu0 0.0
    %346 = vmatprep.subr.mxu0 0.0
    %347 = vmatpush2.msra.mxu0 0.0
    %348 = vmatprep.subr.mxu0 0.0
    %349 = vmatpush2.msra.mxu0 0.0
    %350 = vmatprep.subr.mxu0 0.0
    %351 = vmatpush2.msra.mxu0 0.0
    %352 = vmatprep.subr.mxu0 0.0
    %353 = vmatpush2.msra.mxu0 0.0
    %354 = vmatprep.subr.mxu0 0.0
    %355 = vmatpush2.msra.mxu0 0.0
    %356 = vmatprep.subr.mxu0 0.0
    %357 = vmatpush2.msra.mxu0 0.0
    %358 = vmatprep.subr.mxu0 0.0
    %359 = vmatpush2.msra.mxu0 0.0
    %360 = vmatprep.subr.mxu0 0.0
    %361 = vmatpush2.msra.mxu0 0.0
    %362 = vmatprep.subr.mxu0 0.0
    %363 = vmatpush2.msra.mxu0 0.0
    %364 = vmatprep.subr.mxu0 0.0
    %365 = vmatpush2.msra.mxu0 0.0
    %366 = vmatprep.subr.mxu0 0.0
    %367 = vmatpush2.msra.mxu0 0.0
    %368 = vmatprep.subr.mxu0 0.0
    %369 = vmatpush2.msra.mxu0 0.0
    %370 = vmatprep.subr.mxu0 0.0
    %371 = vmatpush2.msra.mxu0 0.0
    %372 = vmatprep.subr.mxu0 0.0
    %373 = vmatpush2.msra.mxu0 0.0
    %374 = vmatprep.mubr.f32.mxu0 0.0
    %375 = vmatmul.mubr.f32.gmra.mxu0 %v96
    %v376 = vpop.f32.mrf.mxu0
    %v377 = vadd.f32 0.0, %v376
    %v378 = vpop.f32.mrf.mxu0
    %379 = vmatprep.mubr.f32.mxu0 0.0
    %380 = vmatmul.mubr.f32.gmra.mxu0 %v97
    %v381 = vpop.f32.mrf.mxu0
    %v382 = vadd.f32 0.0, %v381
    %v383 = vpop.f32.mrf.mxu0
    %384 = vdwg.mxu0
    %v385 = vadd.f32 %v292, %v377
    %v386 = vadd.f32 %v293, %v382
    %387 = vst [vmem:[#allocation4] sm:$0xff] %v385
    %388 = vst [vmem:[#allocation4 + $0x8] sm:$0xff] %v386
    // Predicated region
    $region50: #{tpu_custom_call.1} parent=1 // pred_check
      %p389 = pneg %p86
    $region51: #{tpu_custom_call.1} parent=1 // pred_check_branch
      %391 = sbr.rel (%p389) target = $region53
    $region52: #{tpu_custom_call.1} parent=1 // pred_region
      %v392 = vld [vmem:[#allocation2] sm:$0xff]
      %v393 = vld [vmem:[#allocation2 + $0x8] sm:$0xff]
      %v394 = vld [vmem:[%s4] sm:$0x1]
      %v396 = vlaneseq
      %v397 = vshrl.u32 %v396, 7
      %v398 = vsub.s32 0, %v397
      %v399 = vrot.slane %v394, %v398
      %v401 = vadd.f32 %v392, %v399
      %v402 = vadd.f32 %v393, %v399
      %403 = vst [vmem:[#allocation13] sm:$0xff] %v401
      %404 = vst [vmem:[#allocation13 + $0x8] sm:$0xff] %v402
      %v405 = vld [vmem:[#allocation3] sm:$0xff]
      %v406 = vld [vmem:[#allocation3 + $0x8] sm:$0xff]
      %v407 = vld [vmem:[%s5] sm:$0x1]
      %v409 = vlaneseq
      %v410 = vshrl.u32 %v409, 7
      %v411 = vsub.s32 0, %v410
      %v412 = vrot.slane %v407, %v411
      %v414 = vadd.f32 %v405, %v412
      %v415 = vadd.f32 %v406, %v412
      %416 = vst [vmem:[#allocation14] sm:$0xff] %v414
      %417 = vst [vmem:[#allocation14 + $0x8] sm:$0xff] %v415
      %v418 = vld [vmem:[#allocation4] sm:$0xff]
      %v419 = vld [vmem:[#allocation4 + $0x8] sm:$0xff]
      %v420 = vld [vmem:[%s6] sm:$0x1]
      %v422 = vlaneseq
      %v423 = vshrl.u32 %v422, 7
      %v424 = vsub.s32 0, %v423
      %v425 = vrot.slane %v420, %v424
      %v427 = vadd.f32 %v418, %v425
      %v428 = vadd.f32 %v419, %v425
      %429 = vst [vmem:[#allocation16] sm:$0xff] %v427
      %430 = vst [vmem:[#allocation16 + $0x8] sm:$0xff] %v428
    $region53: #{tpu_custom_call.1} parent=1 // pred_fallthru
      _
    // Predicated region
    $region54: #{tpu_custom_call.1} parent=1 // pred_check
      _
    $region55: #{tpu_custom_call.1} parent=1 // pred_check_branch
      %432 = sbr.rel (0) target = $region57
    $region56: #{tpu_custom_call.1} parent=1 // pred_region
      %s434 = ssub.s32 256, 256
      %435 = vsyncadd [#allocation7], %s434
      %s436 = sshll.u32 [#allocation13], 4
      %s437 = int_to_ptr.vmem [resolvable:$true] %s436
      %442 = dma.vmem_to_hbm [thread:$0]  %s437, 256, %s7, [#allocation7], 128, 128, 8
    $region57: #{tpu_custom_call.1} parent=1 // pred_fallthru
      _
    // Predicated region
    $region58: #{tpu_custom_call.1} parent=1 // pred_check
      _
    $region59: #{tpu_custom_call.1} parent=1 // pred_check_branch
      %444 = sbr.rel (0) target = $region61
    $region60: #{tpu_custom_call.1} parent=1 // pred_region
      %s446 = ssub.s32 256, 256
      %447 = vsyncadd [#allocation15], %s446
      %s448 = sshll.u32 [#allocation14], 4
      %s449 = int_to_ptr.vmem [resolvable:$true] %s448
      %454 = dma.vmem_to_hbm [thread:$0]  %s449, 256, %s8, [#allocation15], 128, 128, 8
    $region61: #{tpu_custom_call.1} parent=1 // pred_fallthru
      _
    // Predicated region
    $region62: #{tpu_custom_call.1} parent=1 // pred_check
      _
    $region63: #{tpu_custom_call.1} parent=1 // pred_check_branch
      %456 = sbr.rel (0) target = $region65
    $region64: #{tpu_custom_call.1} parent=1 // pred_region
      %s458 = ssub.s32 256, 256
      %459 = vsyncadd [#allocation15], %s458
      %s460 = sshll.u32 [#allocation16], 4
      %s461 = int_to_ptr.vmem [resolvable:$true] %s460
      %466 = dma.vmem_to_hbm [thread:$0]  %s461, 256, %s9, [#allocation15], 128, 128, 8
    $region65: #{tpu_custom_call.1} parent=1 // pred_fallthru
      _
    // Predicated region
    $region66: #{tpu_custom_call.1} parent=1 // pred_check
      _
    $region67: #{tpu_custom_call.1} parent=1 // pred_check_branch
      %468 = sbr.rel (0) target = $region69
    $region68: #{tpu_custom_call.1} parent=1 // pred_region
      %469 = dma.done [#allocation7], 256
    $region69: #{tpu_custom_call.1} parent=1 // pred_fallthru
      _
    // Predicated region
    $region70: #{tpu_custom_call.1} parent=1 // pred_check
      _
    $region71: #{tpu_custom_call.1} parent=1 // pred_check_branch
      %471 = sbr.rel (0) target = $region73
    $region72: #{tpu_custom_call.1} parent=1 // pred_region
      %472 = dma.done [#allocation15], 256
    $region73: #{tpu_custom_call.1} parent=1 // pred_fallthru
      _
    // Predicated region
    $region74: #{tpu_custom_call.1} parent=1 // pred_check
      _
    $region75: #{tpu_custom_call.1} parent=1 // pred_check_branch
      %474 = sbr.rel (0) target = $region77
    $region76: #{tpu_custom_call.1} parent=1 // pred_region
      %475 = dma.done [#allocation15], 256
    $region77: #{tpu_custom_call.1} parent=1 // pred_fallthru
      _
    %476 = vsyncpa [#allocation6], 1
    %477 = vsyncpa [#allocation9], 1
    %478 = vsyncpa [#allocation12], 1
    %479 = vsyncpa [#allocation7], 1
    %480 = vsyncpa [#allocation15], 1

</llo_original>
